<compile_context>
chip_gen: v5e
topology: v5e:2x2
jax: 0.10.0
libtpu: 0.0.40
codegen_flags: <defaults>
</compile_context>

<pallas_src>
import jax
import jax.numpy as jnp
from jax.experimental import pallas as pl
from jax.experimental.pallas import tpu as pltpu


def _round_up(x: int, m: int) -> int:
    return ((x + m - 1) // m) * m


def _fop_vnet_kernel(x_ref, w1_ref, b1_ref, w2_ref, b2_ref, w3_ref, b3_ref, o_ref):
    x = x_ref[...]                                   # (TILE_B, F), batch on sublanes

    # Layer 1: contract W1 (H, F) with x (TILE_B, F) along F  ==  W1 @ x^T.
    # Result (H, TILE_B): batch moves onto the lane axis and stays there.
    h1 = jax.lax.dot_general(
        w1_ref[...], x,
        dimension_numbers=(((1,), (1,)), ((), ())),
        preferred_element_type=jnp.float32,
    )
    h1 = jnp.maximum(h1 + b1_ref[...], 0.0)          # b1 (H, 1) broadcasts over lanes

    # Layer 2: (H4, H) @ (H, TILE_B) -> (H4, TILE_B); plain MXU matmul, f32 acc.
    h2 = jnp.dot(w2_ref[...], h1, preferred_element_type=jnp.float32)
    h2 = jnp.maximum(h2 + b2_ref[...], 0.0)

    # Layer 3 (out_features == 1): VPU multiply + sublane (XLU) reduce instead
    # of a nearly empty MXU pass.  w3 (H4, 1) broadcasts over lanes.
    v = jnp.sum(h2 * w3_ref[...], axis=0, keepdims=True) + b3_ref[...]   # (1, TILE_B)
    o_ref[...] = v.astype(o_ref.dtype)               # lane-dense store


def fop_vnet_forward(state, params, *, tile_b=16384):
    """state: (B, F). Returns (B, 1) float32 (matches FOPVNetwork.forward)."""
    w1, b1 = params["w1"], params["b1"]      # (H, F),  (H, 1)
    w2, b2 = params["w2"], params["b2"]      # (H4, H), (H4, 1)
    w3, b3 = params["w3"], params["b3"]      # (H4, 1), (1, 1)

    B, F = state.shape
    H, H4 = w1.shape[0], w2.shape[0]

    # If the caller keeps state in HBM as bf16, let layer 1 run bf16 on the MXU
    # by casting only the tiny W1 (H*F elements). No standalone cast of state.
    if w1.dtype != state.dtype:
        w1 = w1.astype(state.dtype)

    # Batch tile: output lane axis carries the batch, so tiles are multiples of
    # 128. Cap at ceil(B/2) (rounded up to 128) so the grid has >= 2 steps for
    # large B (both v7x TensorCores get work), and at 16K rows so the
    # double-buffered (tile_b, F) state block stays well inside the 32 MiB VMEM
    # budget even with 4x lane padding (F=32 of 128 lanes occupied).
    tile_b = int(tile_b)
    tile_b = min(tile_b, _round_up(pl.cdiv(B, 2), 128))
    tile_b = max(128, _round_up(tile_b, 128))
    grid = (pl.cdiv(B, tile_b),)                      # boundary block is clipped; no jnp.pad

    def const_spec(a):
        # Full-array block, same block index every grid step -> VMEM-resident.
        return pl.BlockSpec(a.shape, lambda i: (0, 0))

    grid_spec = pltpu.PrefetchScalarGridSpec(
        num_scalar_prefetch=0,
        grid=grid,
        in_specs=[
            pl.BlockSpec((tile_b, F), lambda i: (i, 0)),      # state tile (pipelined)
            const_spec(w1), const_spec(b1),
            const_spec(w2), const_spec(b2),
            const_spec(w3), const_spec(b3),
        ],
        out_specs=pl.BlockSpec((1, tile_b), lambda i: (0, i)),  # lane-dense output
    )

    itemsize = jnp.dtype(state.dtype).itemsize
    wbytes = sum(int(a.size) * jnp.dtype(a.dtype).itemsize
                 for a in (w1, b1, w2, b2, w3, b3))
    cost = pl.CostEstimate(
        flops=2 * B * (F * H + H * H4 + H4),
        transcendentals=0,
        bytes_accessed=B * F * itemsize + B * 4 + wbytes,
    )

    out = pl.pallas_call(
        _fop_vnet_kernel,
        out_shape=jax.ShapeDtypeStruct((1, B), jnp.float32),
        grid_spec=grid_spec,
        compiler_params=pltpu.CompilerParams(
            dimension_semantics=("parallel",),        # batch sharded over 2 TCs on v7x
            vmem_limit_bytes=32 * 1024 * 1024,        # > v5e's 16 MiB default, safe on v7x
        ),
        cost_estimate=cost,
    )(state, w1, b1, w2, b2, w3, b3)

    # (1, B) lane-dense result -> (B, 1) to match the torch module (tiny copy).
    return out.reshape(B, 1)


def init_params(key, input_shape, vnet_hidden):
    """Deterministic init mimicking torch.nn.Linear (uniform +/- 1/sqrt(fan_in)).

    Weights stored in torch layout (out, in); biases as columns; w3 as a column.
    """
    h4 = vnet_hidden // 4
    k1, k2, k3, k4, k5, k6 = jax.random.split(key, 6)

    def u(k, shape, fan_in):
        bound = 1.0 / jnp.sqrt(jnp.float32(fan_in))
        return jax.random.uniform(k, shape, jnp.float32, -bound, bound)

    return {
        "w1": u(k1, (vnet_hidden, input_shape), input_shape),
        "b1": u(k2, (vnet_hidden, 1), input_shape),
        "w2": u(k3, (h4, vnet_hidden), vnet_hidden),
        "b2": u(k4, (h4, 1), vnet_hidden),
        "w3": u(k5, (h4, 1), h4),          # == torch weight (1, h4) transposed
        "b3": u(k6, (1, 1), h4),
    }


def fop_vnet_reference(state, params):
    """Pure-JAX reference of the same MLP (for correctness check)."""
    h1 = jnp.maximum(state @ params["w1"].T + params["b1"].T, 0.0)
    h2 = jnp.maximum(h1 @ params["w2"].T + params["b2"].T, 0.0)
    return h2 @ params["w3"] + params["b3"]


if __name__ == "__main__":
    key = jax.random.PRNGKey(0)
    k_x, k_x2, k_p = jax.random.split(key, 3)

    # Synthetic config: n_agents=4, per-agent input_shape=8 (mixer "type" path ->
    # input = 8 * 4 = 32), vnet_hidden=32 (hidden//4 = 8), batch=8.
    input_shape = 32
    vnet_hidden = 32
    batch = 8

    state = jax.random.normal(k_x, (batch, input_shape), jnp.float32)
    params = init_params(k_p, input_shape, vnet_hidden)

    fwd = jax.jit(fop_vnet_forward)          # reuse the compiled callable
    v = jax.block_until_ready(fwd(state, params))

    v_ref = fop_vnet_reference(state, params)
    assert v.shape == (batch, 1), v.shape
    assert jnp.allclose(v, v_ref, atol=1e-4, rtol=1e-4), "mismatch vs reference"

    # Extra sanity check: non-divisible batch exercises the multi-step grid and
    # boundary-block clipping introduced to avoid the jnp.pad HBM pass.
    state2 = jax.random.normal(k_x2, (300, input_shape), jnp.float32)
    v2 = jax.block_until_ready(fwd(state2, params))
    v2_ref = fop_vnet_reference(state2, params)
    assert v2.shape == (300, 1), v2.shape
    assert jnp.allclose(v2, v2_ref, atol=1e-4, rtol=1e-4), "mismatch vs reference (clipped grid)"

    print("KERNEL_OK")
</pallas_src>

<mosaic_0001>
module attributes {stable_mosaic.version = 11 : i64} {
  func.func @_fop_vnet_kernel(%arg0: i32, %arg1: memref<128x32xf32, #tpu.memory_space<vmem>>, %arg2: memref<32x32xf32, #tpu.memory_space<vmem>>, %arg3: memref<32x1xf32, #tpu.memory_space<vmem>>, %arg4: memref<8x32xf32, #tpu.memory_space<vmem>>, %arg5: memref<8x1xf32, #tpu.memory_space<vmem>>, %arg6: memref<8x1xf32, #tpu.memory_space<vmem>>, %arg7: memref<1x1xf32, #tpu.memory_space<vmem>>, %arg8: memref<1x128xf32, #tpu.memory_space<vmem>>) attributes {dimension_semantics = [#tpu.dimension_semantics<parallel>], iteration_bounds = array<i64: 1>, scalar_prefetch = 0 : i64, scratch_operands = 0 : i64, tpu.core_type = #tpu.core_type<tc>, window_params = [{transform_indices = @transform_0, window_bounds = array<i64: 128, 32>}, {pipeline_mode = #tpu.pipeline_mode<synchronous>, transform_indices = @transform_1, window_bounds = array<i64: 32, 32>}, {pipeline_mode = #tpu.pipeline_mode<synchronous>, transform_indices = @transform_2, window_bounds = array<i64: 32, 1>}, {pipeline_mode = #tpu.pipeline_mode<synchronous>, transform_indices = @transform_3, window_bounds = array<i64: 8, 32>}, {pipeline_mode = #tpu.pipeline_mode<synchronous>, transform_indices = @transform_4, window_bounds = array<i64: 8, 1>}, {pipeline_mode = #tpu.pipeline_mode<synchronous>, transform_indices = @transform_5, window_bounds = array<i64: 8, 1>}, {pipeline_mode = #tpu.pipeline_mode<synchronous>, transform_indices = @transform_6, window_bounds = array<i64: 1, 1>}, {transform_indices = @transform_7, window_bounds = array<i64: 1, 128>}]} {
    %c0 = arith.constant 0 : index
    %c0_0 = arith.constant 0 : index
    %0 = vector.load %arg1[%c0, %c0_0] : memref<128x32xf32, #tpu.memory_space<vmem>>, vector<128x32xf32>
    %c0_1 = arith.constant 0 : index
    %c0_2 = arith.constant 0 : index
    %1 = vector.load %arg2[%c0_1, %c0_2] : memref<32x32xf32, #tpu.memory_space<vmem>>, vector<32x32xf32>
    %cst = arith.constant dense<0.000000e+00> : vector<32x128xf32>
    %2 = tpu.matmul %1, %0, %cst {dimension_numbers = #tpu.dot_dimension_numbers<[1], [1], [0], [0], [0, 0, 1, 0], [], []>} : vector<32x32xf32>, vector<128x32xf32>, vector<32x128xf32> -> vector<32x128xf32>
    %c0_3 = arith.constant 0 : index
    %c0_4 = arith.constant 0 : index
    %3 = vector.load %arg3[%c0_3, %c0_4] : memref<32x1xf32, #tpu.memory_space<vmem>>, vector<32x1xf32>
    %4 = vector.broadcast %3 : vector<32x1xf32> to vector<32x128xf32>
    %5 = arith.addf %2, %4 : vector<32x128xf32>
    %cst_5 = arith.constant 0.000000e+00 : f32
    %6 = vector.broadcast %cst_5 : f32 to vector<32x128xf32>
    %7 = arith.maximumf %5, %6 : vector<32x128xf32>
    %c0_6 = arith.constant 0 : index
    %c0_7 = arith.constant 0 : index
    %8 = vector.load %arg4[%c0_6, %c0_7] : memref<8x32xf32, #tpu.memory_space<vmem>>, vector<8x32xf32>
    %cst_8 = arith.constant dense<0.000000e+00> : vector<8x128xf32>
    %9 = tpu.matmul %8, %7, %cst_8 {dimension_numbers = #tpu.dot_dimension_numbers<[1], [0], [0], [1], [0, 0, 1, 1], [], []>} : vector<8x32xf32>, vector<32x128xf32>, vector<8x128xf32> -> vector<8x128xf32>
    %c0_9 = arith.constant 0 : index
    %c0_10 = arith.constant 0 : index
    %10 = vector.load %arg5[%c0_9, %c0_10] : memref<8x1xf32, #tpu.memory_space<vmem>>, vector<8x1xf32>
    %11 = vector.broadcast %10 : vector<8x1xf32> to vector<8x128xf32>
    %12 = arith.addf %9, %11 : vector<8x128xf32>
    %cst_11 = arith.constant 0.000000e+00 : f32
    %13 = vector.broadcast %cst_11 : f32 to vector<8x128xf32>
    %14 = arith.maximumf %12, %13 : vector<8x128xf32>
    %c0_12 = arith.constant 0 : index
    %c0_13 = arith.constant 0 : index
    %15 = vector.load %arg6[%c0_12, %c0_13] : memref<8x1xf32, #tpu.memory_space<vmem>>, vector<8x1xf32>
    %16 = vector.broadcast %15 : vector<8x1xf32> to vector<8x128xf32>
    %17 = arith.mulf %14, %16 : vector<8x128xf32>
    %cst_14 = arith.constant dense<0.000000e+00> : vector<128xf32>
    %18 = vector.multi_reduction <add>, %17, %cst_14 [0] : vector<8x128xf32> to vector<128xf32>
    %19 = vector.shape_cast %18 : vector<128xf32> to vector<1x128xf32>
    %c0_15 = arith.constant 0 : index
    %c0_16 = arith.constant 0 : index
    %20 = vector.load %arg7[%c0_15, %c0_16] : memref<1x1xf32, #tpu.memory_space<vmem>>, vector<1x1xf32>
    %21 = vector.broadcast %20 : vector<1x1xf32> to vector<1x128xf32>
    %22 = arith.addf %19, %21 : vector<1x128xf32>
    %c0_17 = arith.constant 0 : index
    %c0_18 = arith.constant 0 : index
    %23 = vector.load %arg8[%c0_17, %c0_18] : memref<1x128xf32, #tpu.memory_space<vmem>>, vector<1x128xf32>
    tpu.vector_store %arg8[%c0_17, %c0_18], %22 {strides = array<i32>} : memref<1x128xf32, #tpu.memory_space<vmem>>, vector<1x128xf32>,
    return
  }
  func.func @transform_0(%arg0: i32) -> (i32, i32) {
    %c0_i32 = arith.constant 0 : i32
    %c0_i32_0 = arith.constant 0 : i32
    return %arg0, %c0_i32 : i32, i32
  }
  func.func @transform_1(%arg0: i32) -> (i32, i32) {
    %c0_i32 = arith.constant 0 : i32
    %c0_i32_0 = arith.constant 0 : i32
    %c0_i32_1 = arith.constant 0 : i32
    return %c0_i32, %c0_i32_0 : i32, i32
  }
  func.func @transform_2(%arg0: i32) -> (i32, i32) {
    %c0_i32 = arith.constant 0 : i32
    %c0_i32_0 = arith.constant 0 : i32
    %c0_i32_1 = arith.constant 0 : i32
    return %c0_i32, %c0_i32_0 : i32, i32
  }
  func.func @transform_3(%arg0: i32) -> (i32, i32) {
    %c0_i32 = arith.constant 0 : i32
    %c0_i32_0 = arith.constant 0 : i32
    %c0_i32_1 = arith.constant 0 : i32
    return %c0_i32, %c0_i32_0 : i32, i32
  }
  func.func @transform_4(%arg0: i32) -> (i32, i32) {
    %c0_i32 = arith.constant 0 : i32
    %c0_i32_0 = arith.constant 0 : i32
    %c0_i32_1 = arith.constant 0 : i32
    return %c0_i32, %c0_i32_0 : i32, i32
  }
  func.func @transform_5(%arg0: i32) -> (i32, i32) {
    %c0_i32 = arith.constant 0 : i32
    %c0_i32_0 = arith.constant 0 : i32
    %c0_i32_1 = arith.constant 0 : i32
    return %c0_i32, %c0_i32_0 : i32, i32
  }
  func.func @transform_6(%arg0: i32) -> (i32, i32) {
    %c0_i32 = arith.constant 0 : i32
    %c0_i32_0 = arith.constant 0 : i32
    %c0_i32_1 = arith.constant 0 : i32
    return %c0_i32, %c0_i32_0 : i32, i32
  }
  func.func @transform_7(%arg0: i32) -> (i32, i32) {
    %c0_i32 = arith.constant 0 : i32
    %c0_i32_0 = arith.constant 0 : i32
    return %c0_i32, %arg0 : i32, i32
  }
}

</mosaic_0001>

<llo_original>
// kernel: fop_vnet_forward.1
$region0: #{fop_vnet_forward.1}
  #allocation0 [shape = 'u32[]', space=smem, size = 0x4, offset = 0x4, fixed_abs, tag = 'smem constant byte address 0x4 - core index']
  #allocation1 [shape = 'u32[72,128]{1,0:T(1,128)}', space=vmem, size = 0x9000, scoped, tag = 'internal scratch']
  #allocation2 [shape = 'f32[1,1]{1,0:T(1,128)S(1)}', space=vmem, size = 0x200, scoped, tag = 'scoped memory for fop_vnet_forward.1']
  %s0 = inlined_call_operand.vmem [shape: f32[8,32], index: 0, kind: input, shape index: {}]
  %s1 = inlined_call_operand.vmem [shape: f32[32,32], index: 1, kind: input, shape index: {}]
  %s2 = inlined_call_operand.vmem [shape: f32[32,1], index: 2, kind: input, shape index: {}]
  %s3 = inlined_call_operand.vmem [shape: f32[8,32], index: 3, kind: input, shape index: {}]
  %s4 = inlined_call_operand.vmem [shape: f32[8,1], index: 4, kind: input, shape index: {}]
  %s5 = inlined_call_operand.vmem [shape: f32[8,1], index: 5, kind: input, shape index: {}]
  %s6 = inlined_call_operand.<no memory space> [shape: f32[1,1], index: 6, kind: input, shape index: {}]
  %s7 = inlined_call_operand.hbm [shape: f32[1,8], index: 7, kind: output, shape index: {}]
  %s8 = sld [smem:[#allocation0]]
  $region38: #{fop_vnet_forward.1} parent=0
    _
  %s10 = ssub.s32 1, %s8
  %s11 = scalar_select 0, %s10, %s8
  %v12 = vstv %s6
  %13 = vst [vmem:[#allocation2] sm:$0x1] %v12
  $region1: #{fop_vnet_forward.1} parent=0
    #allocation3 [shape = 'u8[512]{0}', space=vmem, size = 0x400, scoped, tag = 'output window, operand 0, single buffered']
    #allocation4 [shape = 's32[1]{0}', space=sflag, size = 0x4, scoped, tag = 'scoped memory for fop_vnet_forward.1']
    %14 = vsyncpa [#allocation4], 0
    // Predicated region
    $region2: #{fop_vnet_forward.1} parent=1 // pred_check
      _
    $region3: #{fop_vnet_forward.1} parent=1 // pred_check_branch
      %16 = sbr.rel (0) target = $region5
    $region4: #{fop_vnet_forward.1} parent=1 // pred_region
      _
    $region5: #{fop_vnet_forward.1} parent=1 // pred_fallthru
      _
    // Predicated region
    $region6: #{fop_vnet_forward.1} parent=1 // pred_check
      _
    $region7: #{fop_vnet_forward.1} parent=1 // pred_check_branch
      %18 = sbr.rel (0) target = $region9
    $region8: #{fop_vnet_forward.1} parent=1 // pred_region
      _
    $region9: #{fop_vnet_forward.1} parent=1 // pred_fallthru
      _
    // Predicated region
    $region10: #{fop_vnet_forward.1} parent=1 // pred_check
      _
    $region11: #{fop_vnet_forward.1} parent=1 // pred_check_branch
      %20 = sbr.rel (0) target = $region13
    $region12: #{fop_vnet_forward.1} parent=1 // pred_region
      _
    $region13: #{fop_vnet_forward.1} parent=1 // pred_fallthru
      _
    // Predicated region
    $region14: #{fop_vnet_forward.1} parent=1 // pred_check
      _
    $region15: #{fop_vnet_forward.1} parent=1 // pred_check_branch
      %22 = sbr.rel (0) target = $region17
    $region16: #{fop_vnet_forward.1} parent=1 // pred_region
      _
    $region17: #{fop_vnet_forward.1} parent=1 // pred_fallthru
      _
    // Predicated region
    $region18: #{fop_vnet_forward.1} parent=1 // pred_check
      _
    $region19: #{fop_vnet_forward.1} parent=1 // pred_check_branch
      %24 = sbr.rel (0) target = $region21
    $region20: #{fop_vnet_forward.1} parent=1 // pred_region
      _
    $region21: #{fop_vnet_forward.1} parent=1 // pred_fallthru
      _
    // Predicated region
    $region22: #{fop_vnet_forward.1} parent=1 // pred_check
      _
    $region23: #{fop_vnet_forward.1} parent=1 // pred_check_branch
      %26 = sbr.rel (0) target = $region25
    $region24: #{fop_vnet_forward.1} parent=1 // pred_region
      _
    $region25: #{fop_vnet_forward.1} parent=1 // pred_fallthru
      _
    // Predicated region
    $region26: #{fop_vnet_forward.1} parent=1 // pred_check
      _
    $region27: #{fop_vnet_forward.1} parent=1 // pred_check_branch
      %28 = sbr.rel (0) target = $region29
    $region28: #{fop_vnet_forward.1} parent=1 // pred_region
      _
    $region29: #{fop_vnet_forward.1} parent=1 // pred_fallthru
      _
    %v29 = vld [vmem:[%s0] sm:$0xff]
    %v30 = vld [vmem:[%s0 + $0x8] sm:$0xff]
    %v31 = vld [vmem:[%s0 + $0x10] sm:$0xff]
    %v32 = vld [vmem:[%s0 + $0x18] sm:$0xff]
    %v33 = vld [vmem:[%s0 + $0x20] sm:$0xff]
    %v34 = vld [vmem:[%s0 + $0x28] sm:$0xff]
    %v35 = vld [vmem:[%s0 + $0x30] sm:$0xff]
    %v36 = vld [vmem:[%s0 + $0x38] sm:$0xff]
    %v37 = vld [vmem:[%s0 + $0x40] sm:$0xff]
    %v38 = vld [vmem:[%s0 + $0x48] sm:$0xff]
    %v39 = vld [vmem:[%s0 + $0x50] sm:$0xff]
    %v40 = vld [vmem:[%s0 + $0x58] sm:$0xff]
    %v41 = vld [vmem:[%s0 + $0x60] sm:$0xff]
    %v42 = vld [vmem:[%s0 + $0x68] sm:$0xff]
    %v43 = vld [vmem:[%s0 + $0x70] sm:$0xff]
    %v44 = vld [vmem:[%s0 + $0x78] sm:$0xff]
    %v45 = vld [vmem:[%s1] sm:$0xff]
    %v46 = vld [vmem:[%s1 + $0x8] sm:$0xff]
    %v47 = vld [vmem:[%s1 + $0x10] sm:$0xff]
    %v48 = vld [vmem:[%s1 + $0x18] sm:$0xff]
    %v49 = vld [vmem:[%s2] sm:$0xff]
    %v50 = vld [vmem:[%s2 + $0x8] sm:$0xff]
    %v51 = vld [vmem:[%s2 + $0x10] sm:$0xff]
    %v52 = vld [vmem:[%s2 + $0x18] sm:$0xff]
    %54 = vset.pattern.permute.xlu0 0
    %55 = vperm.xlu0 %54, %v49
    %v56 = vpop.permute.xlu0 %55
    %59 = vset.pattern.permute.xlu0 0
    %60 = vperm.xlu0 %59, %v50
    %v61 = vpop.permute.xlu0 %60
    %64 = vset.pattern.permute.xlu0 0
    %65 = vperm.xlu0 %64, %v51
    %v66 = vpop.permute.xlu0 %65
    %69 = vset.pattern.permute.xlu0 0
    %70 = vperm.xlu0 %69, %v52
    %v71 = vpop.permute.xlu0 %70
    %vm73 = vcmask 261120
    %v75 = vsel %vm73, %v45, 0
    %v78 = vsel %vm73, %v46, 0
    %v81 = vsel %vm73, %v47, 0
    %v84 = vsel %vm73, %v48, 0
    %v87 = vsel %vm73, %v29, 0
    %v90 = vsel %vm73, %v30, 0
    %v93 = vsel %vm73, %v31, 0
    %v96 = vsel %vm73, %v32, 0
    %v99 = vsel %vm73, %v33, 0
    %v102 = vsel %vm73, %v34, 0
    %v105 = vsel %vm73, %v35, 0
    %v108 = vsel %vm73, %v36, 0
    %v111 = vsel %vm73, %v37, 0
    %v114 = vsel %vm73, %v38, 0
    %v117 = vsel %vm73, %v39, 0
    %v120 = vsel %vm73, %v40, 0
    %v123 = vsel %vm73, %v41, 0
    %v126 = vsel %vm73, %v42, 0
    %v129 = vsel %vm73, %v43, 0
    %v132 = vsel %vm73, %v44, 0
    %134 = vmatpush.xpose.msra.mxu0 %v132
    %135 = vmatpush.xpose.msra.mxu0 %v129
    %136 = vmatpush.xpose.msra.mxu0 %v126
    %137 = vmatpush.xpose.msra.mxu0 %v123
    %138 = vmatpush.xpose.msra.mxu0 %v120
    %139 = vmatpush.xpose.msra.mxu0 %v117
    %140 = vmatpush.xpose.msra.mxu0 %v114
    %141 = vmatpush.xpose.msra.mxu0 %v111
    %142 = vmatpush.xpose.msra.mxu0 %v108
    %143 = vmatpush.xpose.msra.mxu0 %v105
    %144 = vmatpush.xpose.msra.mxu0 %v102
    %145 = vmatpush.xpose.msra.mxu0 %v99
    %146 = vmatpush.xpose.msra.mxu0 %v96
    %147 = vmatpush.xpose.msra.mxu0 %v93
    %148 = vmatpush.xpose.msra.mxu0 %v90
    %149 = vmatpush.xpose.msra.mxu0 %v87
    %150 = vmatmul.f32.gmra.mxu0 %v75
    %v151 = vpop.f32.mrf.mxu0
    %v152 = vadd.f32 %v56, %v151
    %153 = vmatmul.f32.gmra.mxu0 %v78
    %v154 = vpop.f32.mrf.mxu0
    %v155 = vadd.f32 %v61, %v154
    %156 = vmatmul.f32.gmra.mxu0 %v81
    %v157 = vpop.f32.mrf.mxu0
    %v158 = vadd.f32 %v66, %v157
    %159 = vmatmul.f32.gmra.mxu0 %v84
    %v160 = vpop.f32.mrf.mxu0
    %v161 = vadd.f32 %v71, %v160
    %162 = vdwg.mxu0
    %v163 = vmax.f32 %v152, 0.0
    %v164 = vmax.f32 %v155, 0.0
    %v165 = vmax.f32 %v158, 0.0
    %v166 = vmax.f32 %v161, 0.0
    %v167 = vld [vmem:[%s3] sm:$0xff]
    %v168 = vld [vmem:[%s4] sm:$0xff]
    %170 = vset.pattern.permute.xlu0 0
    %171 = vperm.xlu0 %170, %v168
    %v172 = vpop.permute.xlu0 %171
    %v175 = vsel %vm73, %v167, 0
    %177 = vmatpush.msra.mxu0 0.0
    %178 = vmatpush.msra.mxu0 0.0
    %179 = vmatpush.msra.mxu0 0.0
    %180 = vmatpush.msra.mxu0 0.0
    %181 = vmatpush.msra.mxu0 0.0
    %182 = vmatpush.msra.mxu0 0.0
    %183 = vmatpush.msra.mxu0 0.0
    %184 = vmatpush.msra.mxu0 0.0
    %185 = vmatpush.msra.mxu0 0.0
    %186 = vmatpush.msra.mxu0 0.0
    %187 = vmatpush.msra.mxu0 0.0
    %188 = vmatpush.msra.mxu0 0.0
    %189 = vmatpush.msra.mxu0 %v166
    %190 = vmatpush.msra.mxu0 %v165
    %191 = vmatpush.msra.mxu0 %v164
    %192 = vmatpush.msra.mxu0 %v163
    %193 = vmatmul.f32.gmra.mxu0 %v175
    %v194 = vpop.f32.mrf.mxu0
    %v195 = vadd.f32 %v172, %v194
    %196 = vdwg.mxu0
    %v197 = vmax.f32 %v195, 0.0
    %v198 = vld [vmem:[%s5] sm:$0xff]
    %200 = vset.pattern.permute.xlu0 0
    %201 = vperm.xlu0 %200, %v198
    %v202 = vpop.permute.xlu0 %201
    %v204 = vmul.f32 %v197, %v202
    %v205 = vrot.slane %v204, 4
    %v206 = vadd.f32 %v204, %v205
    %v207 = vrot.slane %v206, 2
    %v208 = vadd.f32 %v206, %v207
    %v209 = vrot.slane %v208, 1
    %v210 = vadd.f32 %v208, %v209
    %v211 = vld [vmem:[#allocation2] sm:$0x1]
    %213 = vset.pattern.permute.xlu0 0
    %214 = vperm.xlu0 %213, %v211
    %v215 = vpop.permute.xlu0 %214
    %v217 = vperm.slane %v215, 0
    %v218 = vadd.f32 %v210, %v217
    %219 = vst [vmem:[#allocation3] sm:$0x1] %v218
    // Predicated region
    $region30: #{fop_vnet_forward.1} parent=1 // pred_check
      _
    $region31: #{fop_vnet_forward.1} parent=1 // pred_check_branch
      %221 = sbr.rel (0) target = $region33
    $region32: #{fop_vnet_forward.1} parent=1 // pred_region
      %223 = vsyncadd [#allocation4], 0
      %s225 = sshll.u32 [#allocation3], 4
      %s226 = int_to_ptr.vmem [resolvable:$true] %s225
      %s227 = sshll.u32 %s7, 4
      %s228 = int_to_ptr.hbm [resolvable:$true] %s227
      %230 = dma.vmem_to_hbm [thread:$0]  %s226, 16, %s228, [#allocation4]
    $region33: #{fop_vnet_forward.1} parent=1 // pred_fallthru
      _
    // Predicated region
    $region34: #{fop_vnet_forward.1} parent=1 // pred_check
      _
    $region35: #{fop_vnet_forward.1} parent=1 // pred_check_branch
      %232 = sbr.rel (0) target = $region37
    $region36: #{fop_vnet_forward.1} parent=1 // pred_region
      %234 = dma.done [#allocation4], 16
    $region37: #{fop_vnet_forward.1} parent=1 // pred_fallthru
      _
    %235 = vsyncpa [#allocation4], 1

</llo_original>
